<compile_context>
chip_gen: v7x
topology: tpu7x:2x2x1
jax: 0.10.0
libtpu: 0.0.40
codegen_flags: <defaults>
</compile_context>

<pallas_src>
import functools

import jax
import jax.numpy as jnp
from jax.experimental import pallas as pl
from jax.experimental.pallas import tpu as pltpu

IN_F = 3
H1 = 256
H2 = 512
OUT_F = 6
OUT_MXU = 128        # fc3 MXU width (padded); only the first 6 columns are real
OUT_STORE = 8        # lane width actually written to HBM (real outputs in [:, :6])
BN_EPS = 1e-5
TB_APPLY_MAX = 2048  # apply-pass batch tile
TB_STATS_MAX = 4096  # stats-pass batch tile (VPU-only, VMEM-light)
FUSED_MAX = 1024     # batches up to this size use the single fused kernel
VMEM_LIMIT = 32 * 1024 * 1024


def _round_up(x, m):
    return (x + m - 1) // m * m


def _fc1_relu(x, w1, b1):
    """(TB,3) -> (TB,256) on the VPU: three broadcast mul-adds, no MXU."""
    h1 = (x[:, 0:1] * w1[0:1, :]
          + x[:, 1:2] * w1[1:2, :]
          + x[:, 2:3] * w1[2:3, :]
          + b1)
    return jnp.maximum(h1, 0.0)


# ----------------------------------------------------------------------------
# Kernels
# ----------------------------------------------------------------------------
def fk_stats_kernel(x_ref, w1_ref, b1_ref, sum_ref, sumsq_ref):
    """Accumulate batch sum / sum-of-squares of relu(fc1(x)).

    No padding mask: padded (zero) rows contribute exactly relu(b1) each and
    are corrected in XLA by the wrapper.
    """
    @pl.when(pl.program_id(0) == 0)
    def _():
        sum_ref[...] = jnp.zeros_like(sum_ref)
        sumsq_ref[...] = jnp.zeros_like(sumsq_ref)

    h1 = _fc1_relu(x_ref[...], w1_ref[...], b1_ref[...])           # (tb, 256)
    sum_ref[...] += jnp.sum(h1, axis=0, keepdims=True)
    sumsq_ref[...] += jnp.sum(h1 * h1, axis=0, keepdims=True)


def fk_apply_kernel(x_ref, w1_ref, b1_ref, w2_ref, b2_ref, w3_ref, b3_ref,
                    o_ref):
    """fc1+ReLU, (BN folded into fc2), fc2+ReLU, fc3+sigmoid, narrow store."""
    h1 = _fc1_relu(x_ref[...], w1_ref[...], b1_ref[...])           # (tb, 256)

    # BatchNorm already folded into w2/b2 by the wrapper -> straight matmul.
    h2 = jnp.dot(h1.astype(jnp.bfloat16), w2_ref[...],
                 preferred_element_type=jnp.float32) + b2_ref[...]
    h2 = jnp.maximum(h2, 0.0)                                       # (tb, 512)

    h3 = jnp.dot(h2.astype(jnp.bfloat16), w3_ref[...],
                 preferred_element_type=jnp.float32) + b3_ref[...]  # (tb, 128)
    o_ref[...] = jax.nn.sigmoid(h3[:, :OUT_STORE])                  # (tb, 8)


def fk_fused_kernel(x_ref, w1_ref, b1_ref, g_ref, be_ref, w2_ref, b2_ref,
                    w3_ref, b3_ref, o_ref, *, n_rows, need_mask, inv_n):
    """Whole forward (stats + BN + fc2 + fc3) for a batch that fits one tile."""
    h1 = _fc1_relu(x_ref[...], w1_ref[...], b1_ref[...])           # (tb, 256)

    if need_mask:
        row = jax.lax.broadcasted_iota(jnp.int32, (h1.shape[0], 1), 0)
        h1s = jnp.where(row < n_rows, h1, 0.0)
    else:
        h1s = h1

    mean = jnp.sum(h1s, axis=0, keepdims=True) * inv_n              # (1, 256)
    var = jnp.maximum(jnp.sum(h1s * h1s, axis=0, keepdims=True) * inv_n
                      - mean * mean, 0.0)
    scale = jax.lax.rsqrt(var + BN_EPS) * g_ref[...]
    shift = be_ref[...] - mean * scale
    h1n = h1 * scale + shift                                        # f32 VPU

    h2 = jnp.dot(h1n.astype(jnp.bfloat16), w2_ref[...],
                 preferred_element_type=jnp.float32) + b2_ref[...]
    h2 = jnp.maximum(h2, 0.0)

    h3 = jnp.dot(h2.astype(jnp.bfloat16), w3_ref[...],
                 preferred_element_type=jnp.float32) + b3_ref[...]
    o_ref[...] = jax.nn.sigmoid(h3[:, :OUT_STORE])


# ----------------------------------------------------------------------------
# Wrapper
# ----------------------------------------------------------------------------
def prepare_params(params):
    """Pre-cast MXU weights and pad fc3 to the 128-lane MXU width."""
    w3p = jnp.zeros((H2, OUT_MXU), jnp.float32).at[:, :OUT_F].set(params["w3"])
    b3p = jnp.zeros((1, OUT_MXU), jnp.float32).at[:, :OUT_F].set(params["b3"])
    return {
        "w1": params["w1"].astype(jnp.float32),       # stays f32 (VPU path)
        "b1": params["b1"],
        "gamma": params["gamma"],
        "beta": params["beta"],
        "w2_f32": params["w2"].astype(jnp.float32),   # for BN folding
        "w2_bf16": params["w2"].astype(jnp.bfloat16),  # for fused small-batch path
        "b2": params["b2"],
        "w3p": w3p.astype(jnp.bfloat16),
        "b3p": b3p,
    }


def _fk_forward_fused(x, p):
    """Single-kernel path for small batches (stats computed in-kernel)."""
    B = x.shape[0]
    b_pad = _round_up(B, 8)
    if b_pad != B:
        x = jnp.pad(x, ((0, b_pad - B), (0, 0)))
    full = lambda i: (0, 0)

    kernel = functools.partial(fk_fused_kernel, n_rows=B,
                               need_mask=(b_pad != B), inv_n=1.0 / B)
    out = pl.pallas_call(
        kernel,
        out_shape=jax.ShapeDtypeStruct((b_pad, OUT_STORE), jnp.float32),
        grid_spec=pltpu.PrefetchScalarGridSpec(
            num_scalar_prefetch=0,
            grid=(1,),
            in_specs=[pl.BlockSpec((b_pad, IN_F), full),
                      pl.BlockSpec((IN_F, H1), full),
                      pl.BlockSpec((1, H1), full),
                      pl.BlockSpec((1, H1), full),
                      pl.BlockSpec((1, H1), full),
                      pl.BlockSpec((H1, H2), full),
                      pl.BlockSpec((1, H2), full),
                      pl.BlockSpec((H2, OUT_MXU), full),
                      pl.BlockSpec((1, OUT_MXU), full)],
            out_specs=pl.BlockSpec((b_pad, OUT_STORE), full)),
        compiler_params=pltpu.CompilerParams(
            dimension_semantics=("arbitrary",),
            vmem_limit_bytes=VMEM_LIMIT),
        cost_estimate=pl.CostEstimate(
            flops=2 * b_pad * (IN_F * H1 + H1 * H2 + H2 * OUT_MXU),
            transcendentals=b_pad * OUT_STORE + H1,
            bytes_accessed=(b_pad * IN_F * 4 + b_pad * OUT_STORE * 4
                            + IN_F * H1 * 4 + H1 * H2 * 2 + H2 * OUT_MXU * 2
                            + (3 * H1 + H2 + OUT_MXU) * 4)),
    )(x, p["w1"], p["b1"], p["gamma"], p["beta"], p["w2_bf16"], p["b2"],
      p["w3p"], p["b3p"])
    return out[:B, :OUT_F]


def _fk_forward_two_pass(x, p, tb_apply_max, tb_stats_max):
    """Two-pass path: stats pallas_call -> fold BN into fc2 -> apply pallas_call."""
    B = x.shape[0]
    full = lambda i: (0, 0)
    tile = lambda i: (i, 0)

    # ---- pass 1: BN batch statistics (grid reduction over large tiles) ----
    tb_s = min(_round_up(B, 8), tb_stats_max)
    bs_pad = _round_up(B, tb_s)
    xs = jnp.pad(x, ((0, bs_pad - B), (0, 0))) if bs_pad != B else x
    nb_s = bs_pad // tb_s
    sums, sumsqs = pl.pallas_call(
        fk_stats_kernel,
        out_shape=(jax.ShapeDtypeStruct((1, H1), jnp.float32),
                   jax.ShapeDtypeStruct((1, H1), jnp.float32)),
        grid_spec=pltpu.PrefetchScalarGridSpec(
            num_scalar_prefetch=0,
            grid=(nb_s,),
            in_specs=[pl.BlockSpec((tb_s, IN_F), tile),
                      pl.BlockSpec((IN_F, H1), full),
                      pl.BlockSpec((1, H1), full)],
            out_specs=(pl.BlockSpec((1, H1), full),
                       pl.BlockSpec((1, H1), full))),
        compiler_params=pltpu.CompilerParams(
            dimension_semantics=("arbitrary",),
            vmem_limit_bytes=VMEM_LIMIT),
    )(xs, p["w1"], p["b1"])

    # Padded rows (x == 0) each contribute exactly relu(b1); correct in XLA
    # instead of masking inside the kernel.
    n_pad = bs_pad - B
    if n_pad:
        h1_pad = jnp.maximum(p["b1"], 0.0)
        sums = sums - n_pad * h1_pad
        sumsqs = sumsqs - n_pad * h1_pad * h1_pad

    # ---- fold BatchNorm into fc2 (f32 in XLA, then cast to bf16) ----
    mean = sums / B
    var = jnp.maximum(sumsqs / B - mean * mean, 0.0)
    scale = jax.lax.rsqrt(var + BN_EPS) * p["gamma"]                 # (1, H1)
    shift = p["beta"] - mean * scale                                 # (1, H1)
    w2f = (p["w2_f32"] * scale.reshape(H1, 1)).astype(jnp.bfloat16)  # (H1, H2)
    b2f = p["b2"] + shift @ p["w2_f32"]                              # (1, H2)

    # ---- pass 2: apply (independent batch tiles, >= 2 for v7x megacore) ----
    tb = min(tb_apply_max, _round_up(pl.cdiv(B, 2), 8))
    b_pad = _round_up(B, tb)
    xa = jnp.pad(x, ((0, b_pad - B), (0, 0))) if b_pad != B else x
    nb = b_pad // tb

    out = pl.pallas_call(
        fk_apply_kernel,
        out_shape=jax.ShapeDtypeStruct((b_pad, OUT_STORE), jnp.float32),
        grid_spec=pltpu.PrefetchScalarGridSpec(
            num_scalar_prefetch=0,
            grid=(nb,),
            in_specs=[pl.BlockSpec((tb, IN_F), tile),
                      pl.BlockSpec((IN_F, H1), full),
                      pl.BlockSpec((1, H1), full),
                      pl.BlockSpec((H1, H2), full),
                      pl.BlockSpec((1, H2), full),
                      pl.BlockSpec((H2, OUT_MXU), full),
                      pl.BlockSpec((1, OUT_MXU), full)],
            out_specs=pl.BlockSpec((tb, OUT_STORE), tile)),
        compiler_params=pltpu.CompilerParams(
            dimension_semantics=("parallel",),
            vmem_limit_bytes=VMEM_LIMIT),
        cost_estimate=pl.CostEstimate(
            flops=2 * b_pad * (IN_F * H1 + H1 * H2 + H2 * OUT_MXU),
            transcendentals=b_pad * OUT_STORE,
            bytes_accessed=(b_pad * IN_F * 4 + b_pad * OUT_STORE * 4
                            + IN_F * H1 * 4 + H1 * H2 * 2 + H2 * OUT_MXU * 2
                            + (H1 + H2 + OUT_MXU) * 4)),
    )(xa, p["w1"], p["b1"], w2f, b2f, p["w3p"], p["b3p"])

    return out[:B, :OUT_F]


def fk_forward(x, p, *, tb_apply_max=TB_APPLY_MAX, tb_stats_max=TB_STATS_MAX,
               fused_max=FUSED_MAX):
    B = x.shape[0]
    if B <= fused_max:
        return _fk_forward_fused(x, p)
    return _fk_forward_two_pass(x, p, tb_apply_max, tb_stats_max)


# ----------------------------------------------------------------------------
# Parameter init and references
# ----------------------------------------------------------------------------
def init_params(key):
    """Deterministic parameter init (PyTorch Linear-style uniform ranges)."""
    ks = jax.random.split(key, 6)

    def linear(kw, kb, fan_in, fan_out):
        bound = 1.0 / jnp.sqrt(fan_in)
        w = jax.random.uniform(kw, (fan_in, fan_out), jnp.float32, -bound, bound)
        b = jax.random.uniform(kb, (1, fan_out), jnp.float32, -bound, bound)
        return w, b

    w1, b1 = linear(ks[0], ks[1], IN_F, H1)
    w2, b2 = linear(ks[2], ks[3], H1, H2)
    w3, b3 = linear(ks[4], ks[5], H2, OUT_F)
    return {
        "w1": w1, "b1": b1,
        "gamma": jnp.ones((1, H1), jnp.float32),   # BatchNorm1d weight
        "beta": jnp.zeros((1, H1), jnp.float32),   # BatchNorm1d bias
        "w2": w2, "b2": b2,
        "w3": w3, "b3": b3,
    }


def fk_reference_f32(x, p):
    """Full-f32 PyTorch-semantics reference (training-mode BN, biased var)."""
    h1 = jnp.maximum(x @ p["w1"] + p["b1"], 0.0)
    mean = jnp.mean(h1, axis=0, keepdims=True)
    var = jnp.mean((h1 - mean) ** 2, axis=0, keepdims=True)
    h1 = (h1 - mean) * jax.lax.rsqrt(var + BN_EPS) * p["gamma"] + p["beta"]
    h2 = jnp.maximum(h1 @ p["w2"] + p["b2"], 0.0)
    return jax.nn.sigmoid(h2 @ p["w3"] + p["b3"])


def fk_reference_matched_fused(x, p, prep):
    """Reference mirroring the fused kernel's bf16/one-pass-BN math."""
    n = x.shape[0]
    h1 = jnp.maximum(x @ p["w1"] + p["b1"], 0.0)
    mean = jnp.sum(h1, axis=0, keepdims=True) / n
    var = jnp.maximum(jnp.sum(h1 * h1, axis=0, keepdims=True) / n - mean * mean, 0.0)
    scale = jax.lax.rsqrt(var + BN_EPS) * p["gamma"]
    h1n = h1 * scale + (p["beta"] - mean * scale)
    h2 = jnp.maximum(jnp.dot(h1n.astype(jnp.bfloat16), prep["w2_bf16"],
                             preferred_element_type=jnp.float32) + p["b2"], 0.0)
    h3 = jnp.dot(h2.astype(jnp.bfloat16), prep["w3p"],
                 preferred_element_type=jnp.float32) + prep["b3p"]
    return jax.nn.sigmoid(h3)[:, :OUT_F]


def fk_reference_matched_folded(x, p, prep):
    """Reference mirroring the two-pass kernel's BN-folded-into-fc2 math."""
    n = x.shape[0]
    h1 = jnp.maximum(x @ p["w1"] + p["b1"], 0.0)
    mean = jnp.sum(h1, axis=0, keepdims=True) / n
    var = jnp.maximum(jnp.sum(h1 * h1, axis=0, keepdims=True) / n - mean * mean, 0.0)
    scale = jax.lax.rsqrt(var + BN_EPS) * p["gamma"]
    shift = p["beta"] - mean * scale
    w2f = (prep["w2_f32"] * scale.reshape(H1, 1)).astype(jnp.bfloat16)
    b2f = p["b2"] + shift @ prep["w2_f32"]
    h2 = jnp.maximum(jnp.dot(h1.astype(jnp.bfloat16), w2f,
                             preferred_element_type=jnp.float32) + b2f, 0.0)
    h3 = jnp.dot(h2.astype(jnp.bfloat16), prep["w3p"],
                 preferred_element_type=jnp.float32) + prep["b3p"]
    return jax.nn.sigmoid(h3)[:, :OUT_F]


if __name__ == "__main__":
    key = jax.random.PRNGKey(0)
    k_param, k_x1, k_x2 = jax.random.split(key, 3)

    params = init_params(k_param)
    prep = prepare_params(params)

    # --- small batch (bsize=8): single fused-kernel path ---
    B1 = 8
    x1 = jax.random.normal(k_x1, (B1, IN_F), jnp.float32)
    out1 = jax.block_until_ready(fk_forward(x1, prep))
    assert out1.shape == (B1, OUT_F)
    ref1m = fk_reference_matched_fused(x1, params, prep)
    assert jnp.allclose(out1, ref1m, atol=2e-3, rtol=2e-3), (
        jnp.max(jnp.abs(out1 - ref1m)))
    ref1f = fk_reference_f32(x1, params)
    assert jnp.allclose(out1, ref1f, atol=2e-2, rtol=2e-2), (
        jnp.max(jnp.abs(out1 - ref1f)))

    # --- larger batch forced through the two-pass (stats + folded-BN) path,
    #     with small tiles so padding / multi-tile reduction is exercised ---
    B2 = 600
    x2 = jax.random.normal(k_x2, (B2, IN_F), jnp.float32)
    out2 = jax.block_until_ready(
        fk_forward(x2, prep, fused_max=0, tb_apply_max=256, tb_stats_max=256))
    assert out2.shape == (B2, OUT_F)
    ref2m = fk_reference_matched_folded(x2, params, prep)
    assert jnp.allclose(out2, ref2m, atol=2e-3, rtol=2e-3), (
        jnp.max(jnp.abs(out2 - ref2m)))
    ref2f = fk_reference_f32(x2, params)
    assert jnp.allclose(out2, ref2f, atol=2e-2, rtol=2e-2), (
        jnp.max(jnp.abs(out2 - ref2f)))

    print("KERNEL_OK")
</pallas_src>

<mosaic_0001>
module attributes {stable_mosaic.version = 11 : i64} {
  func.func @fk_fused_kernel(%arg0: i32, %arg1: memref<8x3xf32, #tpu.memory_space<vmem>>, %arg2: memref<3x256xf32, #tpu.memory_space<vmem>>, %arg3: memref<1x256xf32, #tpu.memory_space<vmem>>, %arg4: memref<1x256xf32, #tpu.memory_space<vmem>>, %arg5: memref<1x256xf32, #tpu.memory_space<vmem>>, %arg6: memref<256x512xbf16, #tpu.memory_space<vmem>>, %arg7: memref<1x512xf32, #tpu.memory_space<vmem>>, %arg8: memref<512x128xbf16, #tpu.memory_space<vmem>>, %arg9: memref<1x128xf32, #tpu.memory_space<vmem>>, %arg10: memref<8x8xf32, #tpu.memory_space<vmem>>) attributes {dimension_semantics = [#tpu.dimension_semantics<arbitrary>], iteration_bounds = array<i64: 1>, scalar_prefetch = 0 : i64, scratch_operands = 0 : i64, tpu.core_type = #tpu.core_type<tc>, window_params = [{pipeline_mode = #tpu.pipeline_mode<synchronous>, transform_indices = @transform_0, window_bounds = array<i64: 8, 3>}, {pipeline_mode = #tpu.pipeline_mode<synchronous>, transform_indices = @transform_1, window_bounds = array<i64: 3, 256>}, {pipeline_mode = #tpu.pipeline_mode<synchronous>, transform_indices = @transform_2, window_bounds = array<i64: 1, 256>}, {pipeline_mode = #tpu.pipeline_mode<synchronous>, transform_indices = @transform_3, window_bounds = array<i64: 1, 256>}, {pipeline_mode = #tpu.pipeline_mode<synchronous>, transform_indices = @transform_4, window_bounds = array<i64: 1, 256>}, {pipeline_mode = #tpu.pipeline_mode<synchronous>, transform_indices = @transform_5, window_bounds = array<i64: 256, 512>}, {pipeline_mode = #tpu.pipeline_mode<synchronous>, transform_indices = @transform_6, window_bounds = array<i64: 1, 512>}, {pipeline_mode = #tpu.pipeline_mode<synchronous>, transform_indices = @transform_7, window_bounds = array<i64: 512, 128>}, {pipeline_mode = #tpu.pipeline_mode<synchronous>, transform_indices = @transform_8, window_bounds = array<i64: 1, 128>}, {pipeline_mode = #tpu.pipeline_mode<synchronous>, transform_indices = @transform_9, window_bounds = array<i64: 8, 8>}]} {
    %c0 = arith.constant 0 : index
    %c0_0 = arith.constant 0 : index
    %0 = vector.load %arg1[%c0, %c0_0] : memref<8x3xf32, #tpu.memory_space<vmem>>, vector<8x3xf32>
    %c0_1 = arith.constant 0 : index
    %c0_2 = arith.constant 0 : index
    %1 = vector.load %arg2[%c0_1, %c0_2] : memref<3x256xf32, #tpu.memory_space<vmem>>, vector<3x256xf32>
    %c0_3 = arith.constant 0 : index
    %c0_4 = arith.constant 0 : index
    %2 = vector.load %arg3[%c0_3, %c0_4] : memref<1x256xf32, #tpu.memory_space<vmem>>, vector<1x256xf32>
    %3 = vector.extract_strided_slice %0 {offsets = [0, 0], sizes = [8, 1], strides = [1, 1]} : vector<8x3xf32> to vector<8x1xf32>
    %4 = vector.extract_strided_slice %1 {offsets = [0, 0], sizes = [1, 256], strides = [1, 1]} : vector<3x256xf32> to vector<1x256xf32>
    %5 = vector.broadcast %3 : vector<8x1xf32> to vector<8x256xf32>
    %6 = vector.broadcast %4 : vector<1x256xf32> to vector<8x256xf32>
    %7 = arith.mulf %5, %6 : vector<8x256xf32>
    %8 = vector.extract_strided_slice %0 {offsets = [0, 1], sizes = [8, 1], strides = [1, 1]} : vector<8x3xf32> to vector<8x1xf32>
    %9 = vector.extract_strided_slice %1 {offsets = [1, 0], sizes = [1, 256], strides = [1, 1]} : vector<3x256xf32> to vector<1x256xf32>
    %10 = vector.broadcast %8 : vector<8x1xf32> to vector<8x256xf32>
    %11 = vector.broadcast %9 : vector<1x256xf32> to vector<8x256xf32>
    %12 = arith.mulf %10, %11 : vector<8x256xf32>
    %13 = arith.addf %7, %12 : vector<8x256xf32>
    %14 = vector.extract_strided_slice %0 {offsets = [0, 2], sizes = [8, 1], strides = [1, 1]} : vector<8x3xf32> to vector<8x1xf32>
    %15 = vector.extract_strided_slice %1 {offsets = [2, 0], sizes = [1, 256], strides = [1, 1]} : vector<3x256xf32> to vector<1x256xf32>
    %16 = vector.broadcast %14 : vector<8x1xf32> to vector<8x256xf32>
    %17 = vector.broadcast %15 : vector<1x256xf32> to vector<8x256xf32>
    %18 = arith.mulf %16, %17 : vector<8x256xf32>
    %19 = arith.addf %13, %18 : vector<8x256xf32>
    %20 = vector.broadcast %2 : vector<1x256xf32> to vector<8x256xf32>
    %21 = arith.addf %19, %20 : vector<8x256xf32>
    %cst = arith.constant 0.000000e+00 : f32
    %22 = vector.broadcast %cst : f32 to vector<8x256xf32>
    %23 = arith.maximumf %21, %22 : vector<8x256xf32>
    %cst_5 = arith.constant dense<0.000000e+00> : vector<256xf32>
    %24 = vector.multi_reduction <add>, %23, %cst_5 [0] : vector<8x256xf32> to vector<256xf32>
    %25 = vector.shape_cast %24 : vector<256xf32> to vector<1x256xf32>
    %cst_6 = arith.constant 1.250000e-01 : f32
    %26 = vector.broadcast %cst_6 : f32 to vector<1x256xf32>
    %27 = arith.mulf %25, %26 : vector<1x256xf32>
    %28 = arith.mulf %23, %23 : vector<8x256xf32>
    %cst_7 = arith.constant dense<0.000000e+00> : vector<256xf32>
    %29 = vector.multi_reduction <add>, %28, %cst_7 [0] : vector<8x256xf32> to vector<256xf32>
    %30 = vector.shape_cast %29 : vector<256xf32> to vector<1x256xf32>
    %cst_8 = arith.constant 1.250000e-01 : f32
    %31 = vector.broadcast %cst_8 : f32 to vector<1x256xf32>
    %32 = arith.mulf %30, %31 : vector<1x256xf32>
    %33 = arith.mulf %27, %27 : vector<1x256xf32>
    %34 = arith.subf %32, %33 : vector<1x256xf32>
    %cst_9 = arith.constant 0.000000e+00 : f32
    %35 = vector.broadcast %cst_9 : f32 to vector<1x256xf32>
    %36 = arith.maximumf %34, %35 : vector<1x256xf32>
    %cst_10 = arith.constant 9.99999974E-6 : f32
    %37 = vector.broadcast %cst_10 : f32 to vector<1x256xf32>
    %38 = arith.addf %36, %37 : vector<1x256xf32>
    %39 = math.rsqrt %38 : vector<1x256xf32>
    %c0_11 = arith.constant 0 : index
    %c0_12 = arith.constant 0 : index
    %40 = vector.load %arg4[%c0_11, %c0_12] : memref<1x256xf32, #tpu.memory_space<vmem>>, vector<1x256xf32>
    %41 = arith.mulf %39, %40 : vector<1x256xf32>
    %c0_13 = arith.constant 0 : index
    %c0_14 = arith.constant 0 : index
    %42 = vector.load %arg5[%c0_13, %c0_14] : memref<1x256xf32, #tpu.memory_space<vmem>>, vector<1x256xf32>
    %43 = arith.mulf %27, %41 : vector<1x256xf32>
    %44 = arith.subf %42, %43 : vector<1x256xf32>
    %45 = vector.broadcast %41 : vector<1x256xf32> to vector<8x256xf32>
    %46 = arith.mulf %23, %45 : vector<8x256xf32>
    %47 = vector.broadcast %44 : vector<1x256xf32> to vector<8x256xf32>
    %48 = arith.addf %46, %47 : vector<8x256xf32>
    %49 = arith.truncf %48 : vector<8x256xf32> to vector<8x256xbf16>
    %c0_15 = arith.constant 0 : index
    %c0_16 = arith.constant 0 : index
    %50 = vector.load %arg6[%c0_15, %c0_16] : memref<256x512xbf16, #tpu.memory_space<vmem>>, vector<256x512xbf16>
    %cst_17 = arith.constant dense<0.000000e+00> : vector<8x512xf32>
    %51 = tpu.matmul %49, %50, %cst_17 {dimension_numbers = #tpu.dot_dimension_numbers<[1], [0], [0], [1], [0, 0, 1, 1], [], []>} : vector<8x256xbf16>, vector<256x512xbf16>, vector<8x512xf32> -> vector<8x512xf32>
    %c0_18 = arith.constant 0 : index
    %c0_19 = arith.constant 0 : index
    %52 = vector.load %arg7[%c0_18, %c0_19] : memref<1x512xf32, #tpu.memory_space<vmem>>, vector<1x512xf32>
    %53 = vector.broadcast %52 : vector<1x512xf32> to vector<8x512xf32>
    %54 = arith.addf %51, %53 : vector<8x512xf32>
    %cst_20 = arith.constant 0.000000e+00 : f32
    %55 = vector.broadcast %cst_20 : f32 to vector<8x512xf32>
    %56 = arith.maximumf %54, %55 : vector<8x512xf32>
    %57 = arith.truncf %56 : vector<8x512xf32> to vector<8x512xbf16>
    %c0_21 = arith.constant 0 : index
    %c0_22 = arith.constant 0 : index
    %58 = vector.load %arg8[%c0_21, %c0_22] : memref<512x128xbf16, #tpu.memory_space<vmem>>, vector<512x128xbf16>
    %cst_23 = arith.constant dense<0.000000e+00> : vector<8x128xf32>
    %59 = tpu.matmul %57, %58, %cst_23 {dimension_numbers = #tpu.dot_dimension_numbers<[1], [0], [0], [1], [0, 0, 1, 1], [], []>} : vector<8x512xbf16>, vector<512x128xbf16>, vector<8x128xf32> -> vector<8x128xf32>
    %c0_24 = arith.constant 0 : index
    %c0_25 = arith.constant 0 : index
    %60 = vector.load %arg9[%c0_24, %c0_25] : memref<1x128xf32, #tpu.memory_space<vmem>>, vector<1x128xf32>
    %61 = vector.broadcast %60 : vector<1x128xf32> to vector<8x128xf32>
    %62 = arith.addf %59, %61 : vector<8x128xf32>
    %63 = vector.extract_strided_slice %62 {offsets = [0, 0], sizes = [8, 8], strides = [1, 1]} : vector<8x128xf32> to vector<8x8xf32>
    %64 = arith.negf %63 : vector<8x8xf32>
    %65 = math.exp %64 : vector<8x8xf32>
    %cst_26 = arith.constant 1.000000e+00 : f32
    %66 = vector.broadcast %cst_26 : f32 to vector<8x8xf32>
    %67 = arith.addf %66, %65 : vector<8x8xf32>
    %68 = arith.divf %66, %67 : vector<8x8xf32>
    %c0_27 = arith.constant 0 : index
    %c0_28 = arith.constant 0 : index
    %69 = vector.load %arg10[%c0_27, %c0_28] : memref<8x8xf32, #tpu.memory_space<vmem>>, vector<8x8xf32>
    tpu.vector_store %arg10[%c0_27, %c0_28], %68 {strides = array<i32>} : memref<8x8xf32, #tpu.memory_space<vmem>>, vector<8x8xf32>,
    return
  }
  func.func @transform_0(%arg0: i32) -> (i32, i32) {
    %c0_i32 = arith.constant 0 : i32
    %c0_i32_0 = arith.constant 0 : i32
    %c0_i32_1 = arith.constant 0 : i32
    return %c0_i32, %c0_i32_0 : i32, i32
  }
  func.func @transform_1(%arg0: i32) -> (i32, i32) {
    %c0_i32 = arith.constant 0 : i32
    %c0_i32_0 = arith.constant 0 : i32
    %c0_i32_1 = arith.constant 0 : i32
    return %c0_i32, %c0_i32_0 : i32, i32
  }
  func.func @transform_2(%arg0: i32) -> (i32, i32) {
    %c0_i32 = arith.constant 0 : i32
    %c0_i32_0 = arith.constant 0 : i32
    %c0_i32_1 = arith.constant 0 : i32
    return %c0_i32, %c0_i32_0 : i32, i32
  }
  func.func @transform_3(%arg0: i32) -> (i32, i32) {
    %c0_i32 = arith.constant 0 : i32
    %c0_i32_0 = arith.constant 0 : i32
    %c0_i32_1 = arith.constant 0 : i32
    return %c0_i32, %c0_i32_0 : i32, i32
  }
  func.func @transform_4(%arg0: i32) -> (i32, i32) {
    %c0_i32 = arith.constant 0 : i32
    %c0_i32_0 = arith.constant 0 : i32
    %c0_i32_1 = arith.constant 0 : i32
    return %c0_i32, %c0_i32_0 : i32, i32
  }
  func.func @transform_5(%arg0: i32) -> (i32, i32) {
    %c0_i32 = arith.constant 0 : i32
    %c0_i32_0 = arith.constant 0 : i32
    %c0_i32_1 = arith.constant 0 : i32
    return %c0_i32, %c0_i32_0 : i32, i32
  }
  func.func @transform_6(%arg0: i32) -> (i32, i32) {
    %c0_i32 = arith.constant 0 : i32
    %c0_i32_0 = arith.constant 0 : i32
    %c0_i32_1 = arith.constant 0 : i32
    return %c0_i32, %c0_i32_0 : i32, i32
  }
  func.func @transform_7(%arg0: i32) -> (i32, i32) {
    %c0_i32 = arith.constant 0 : i32
    %c0_i32_0 = arith.constant 0 : i32
    %c0_i32_1 = arith.constant 0 : i32
    return %c0_i32, %c0_i32_0 : i32, i32
  }
  func.func @transform_8(%arg0: i32) -> (i32, i32) {
    %c0_i32 = arith.constant 0 : i32
    %c0_i32_0 = arith.constant 0 : i32
    %c0_i32_1 = arith.constant 0 : i32
    return %c0_i32, %c0_i32_0 : i32, i32
  }
  func.func @transform_9(%arg0: i32) -> (i32, i32) {
    %c0_i32 = arith.constant 0 : i32
    %c0_i32_0 = arith.constant 0 : i32
    %c0_i32_1 = arith.constant 0 : i32
    return %c0_i32, %c0_i32_0 : i32, i32
  }
}

</mosaic_0001>

<llo_original>
// kernel: tpu_custom_call.1
$region0: #{tpu_custom_call.1}
  #allocation0 [shape = 'u32[]', space=smem, size = 0x4, offset = 0x4, fixed_abs, tag = 'smem constant byte address 0x4 - core index']
  #allocation1 [shape = 'u32[144,128]{1,0:T(1,128)}', space=vmem, size = 0x12000, scoped, tag = 'internal scratch']
  %s0 = inlined_call_operand.vmem [shape: f32[8,3], index: 0, kind: input, shape index: {}]
  %s1 = inlined_call_operand.vmem [shape: f32[3,256], index: 1, kind: input, shape index: {}]
  %s2 = inlined_call_operand.vmem [shape: f32[1,256], index: 2, kind: input, shape index: {}]
  %s3 = inlined_call_operand.vmem [shape: f32[1,256], index: 3, kind: input, shape index: {}]
  %s4 = inlined_call_operand.vmem [shape: f32[1,256], index: 4, kind: input, shape index: {}]
  %s5 = inlined_call_operand.hbm [shape: bf16[256,512], index: 5, kind: input, shape index: {}]
  %s6 = inlined_call_operand.vmem [shape: f32[1,512], index: 6, kind: input, shape index: {}]
  %s7 = inlined_call_operand.hbm [shape: bf16[512,128], index: 7, kind: input, shape index: {}]
  %s8 = inlined_call_operand.vmem [shape: f32[1,128], index: 8, kind: input, shape index: {}]
  %s9 = inlined_call_operand.hbm [shape: f32[8,8], index: 9, kind: output, shape index: {}]
  %s10 = sld [smem:[#allocation0]]
  $region54: #{tpu_custom_call.1} parent=0
    _
  %s12 = ssub.s32 1, %s10
  %s13 = scalar_select 0, %s12, %s10
  $region1: #{tpu_custom_call.1} parent=0
    #allocation2 [shape = 'u8[262144]{0}', space=vmem, size = 0x40000, scoped, tag = 'input window, operand 5, single buffered']
    #allocation3 [shape = 's32[1]{0}', space=sflag, size = 0x4, scoped, tag = 'scoped memory for tpu_custom_call.1']
    #allocation4 [shape = 's32[1]{0}', space=sflag, size = 0x4, scoped, tag = 'scoped memory for tpu_custom_call.1']
    #allocation5 [shape = 'u8[131072]{0}', space=vmem, size = 0x20000, scoped, tag = 'input window, operand 7, single buffered']
    #allocation6 [shape = 's32[1]{0}', space=sflag, size = 0x4, scoped, tag = 'scoped memory for tpu_custom_call.1']
    #allocation7 [shape = 'u8[4096]{0}', space=vmem, size = 0x1000, scoped, tag = 'output window, operand 0, single buffered']
    %14 = vsyncpa [#allocation3], 0
    %15 = vsyncpa [#allocation6], 0
    %16 = vsyncpa [#allocation4], 0
    // Predicated region
    $region2: #{tpu_custom_call.1} parent=1 // pred_check
      _
    $region3: #{tpu_custom_call.1} parent=1 // pred_check_branch
      %18 = sbr.rel (0) target = $region5
    $region4: #{tpu_custom_call.1} parent=1 // pred_region
      _
    $region5: #{tpu_custom_call.1} parent=1 // pred_fallthru
      _
    // Predicated region
    $region6: #{tpu_custom_call.1} parent=1 // pred_check
      _
    $region7: #{tpu_custom_call.1} parent=1 // pred_check_branch
      %20 = sbr.rel (0) target = $region9
    $region8: #{tpu_custom_call.1} parent=1 // pred_region
      _
    $region9: #{tpu_custom_call.1} parent=1 // pred_fallthru
      _
    // Predicated region
    $region10: #{tpu_custom_call.1} parent=1 // pred_check
      _
    $region11: #{tpu_custom_call.1} parent=1 // pred_check_branch
      %22 = sbr.rel (0) target = $region13
    $region12: #{tpu_custom_call.1} parent=1 // pred_region
      _
    $region13: #{tpu_custom_call.1} parent=1 // pred_fallthru
      _
    // Predicated region
    $region14: #{tpu_custom_call.1} parent=1 // pred_check
      _
    $region15: #{tpu_custom_call.1} parent=1 // pred_check_branch
      %24 = sbr.rel (0) target = $region17
    $region16: #{tpu_custom_call.1} parent=1 // pred_region
      _
    $region17: #{tpu_custom_call.1} parent=1 // pred_fallthru
      _
    // Predicated region
    $region18: #{tpu_custom_call.1} parent=1 // pred_check
      _
    $region19: #{tpu_custom_call.1} parent=1 // pred_check_branch
      %26 = sbr.rel (0) target = $region21
    $region20: #{tpu_custom_call.1} parent=1 // pred_region
      _
    $region21: #{tpu_custom_call.1} parent=1 // pred_fallthru
      _
    // Predicated region
    $region22: #{tpu_custom_call.1} parent=1 // pred_check
      _
    $region23: #{tpu_custom_call.1} parent=1 // pred_check_branch
      %28 = sbr.rel (0) target = $region25
    $region24: #{tpu_custom_call.1} parent=1 // pred_region
      %s30 = ssub.s32 8192, 8192
      %31 = vsyncadd [#allocation3], %s30
      %s32 = sshll.u32 [#allocation2], 4
      %s33 = int_to_ptr.vmem [resolvable:$true] %s32
      %38 = dma.hbm_to_vmem [thread:$0]  %s5, 8192, %s33, [#allocation3], 256, 256, 16
    $region25: #{tpu_custom_call.1} parent=1 // pred_fallthru
      _
    // Predicated region
    $region26: #{tpu_custom_call.1} parent=1 // pred_check
      _
    $region27: #{tpu_custom_call.1} parent=1 // pred_check_branch
      %40 = sbr.rel (0) target = $region29
    $region28: #{tpu_custom_call.1} parent=1 // pred_region
      _
    $region29: #{tpu_custom_call.1} parent=1 // pred_fallthru
      _
    // Predicated region
    $region30: #{tpu_custom_call.1} parent=1 // pred_check
      _
    $region31: #{tpu_custom_call.1} parent=1 // pred_check_branch
      %42 = sbr.rel (0) target = $region33
    $region32: #{tpu_custom_call.1} parent=1 // pred_region
      %s44 = ssub.s32 4096, 4096
      %45 = vsyncadd [#allocation6], %s44
      %s46 = sshll.u32 [#allocation5], 4
      %s47 = int_to_ptr.vmem [resolvable:$true] %s46
      %52 = dma.hbm_to_vmem [thread:$0]  %s7, 4096, %s47, [#allocation6], 64, 64, 4
    $region33: #{tpu_custom_call.1} parent=1 // pred_fallthru
      _
    // Predicated region
    $region34: #{tpu_custom_call.1} parent=1 // pred_check
      _
    $region35: #{tpu_custom_call.1} parent=1 // pred_check_branch
      %54 = sbr.rel (0) target = $region37
    $region36: #{tpu_custom_call.1} parent=1 // pred_region
      _
    $region37: #{tpu_custom_call.1} parent=1 // pred_fallthru
      _
    // Predicated region
    $region38: #{tpu_custom_call.1} parent=1 // pred_check
      _
    $region39: #{tpu_custom_call.1} parent=1 // pred_check_branch
      %56 = sbr.rel (0) target = $region41
    $region40: #{tpu_custom_call.1} parent=1 // pred_region
      %57 = dma.done [#allocation3], 8192
    $region41: #{tpu_custom_call.1} parent=1 // pred_fallthru
      _
    // Predicated region
    $region42: #{tpu_custom_call.1} parent=1 // pred_check
      _
    $region43: #{tpu_custom_call.1} parent=1 // pred_check_branch
      %59 = sbr.rel (0) target = $region45
    $region44: #{tpu_custom_call.1} parent=1 // pred_region
      %60 = dma.done [#allocation6], 4096
    $region45: #{tpu_custom_call.1} parent=1 // pred_fallthru
      _
    %v62 = vld [vmem:[%s0] sm:$0xff]
    %v63 = vld [vmem:[%s1] sm:$0x77]
    %v64 = vld [vmem:[%s2] sm:$0x3]
    %66 = vset.pattern.permute.xlu0 0
    %67 = vperm.xlu0 %66, %v62
    %v68 = vpop.permute.xlu0 %67
    %v71 = vlaneseq
    %v72 = vshrl.u32 %v71, 7
    %v73 = vsub.s32 0, %v72
    %v74 = vrot.slane %v63, %v73
    %v75 = vlaneseq
    %v76 = vshrl.u32 %v75, 7
    %v77 = vsub.s32 4, %v76
    %v78 = vrot.slane %v63, %v77
    %v81 = vlaneseq
    %v82 = vshrl.u32 %v81, 7
    %v83 = vsub.s32 0, %v82
    %v84 = vrot.slane %v74, %v83
    %v85 = vlaneseq
    %v86 = vshrl.u32 %v85, 7
    %v87 = vsub.s32 0, %v86
    %v88 = vrot.slane %v78, %v87
    %v89 = vmul.f32 %v68, %v84
    %v90 = vmul.f32 %v68, %v88
    %91 = vset.pattern.permute.xlu0 1
    %92 = vperm.xlu0 %91, %v62
    %v93 = vpop.permute.xlu0 %92
    %v95 = vlaneseq
    %v96 = vshrl.u32 %v95, 7
    %v97 = vsub.s32 1, %v96
    %v98 = vrot.slane %v63, %v97
    %v99 = vlaneseq
    %v100 = vshrl.u32 %v99, 7
    %v101 = vsub.s32 5, %v100
    %v102 = vrot.slane %v63, %v101
    %v105 = vlaneseq
    %v106 = vshrl.u32 %v105, 7
    %v107 = vsub.s32 1, %v106
    %v108 = vrot.slane %v98, %v107
    %v109 = vlaneseq
    %v110 = vshrl.u32 %v109, 7
    %v111 = vsub.s32 1, %v110
    %v112 = vrot.slane %v102, %v111
    %v113 = vmul.f32 %v93, %v108
    %v114 = vmul.f32 %v93, %v112
    %v115 = vadd.f32 %v89, %v113
    %v116 = vadd.f32 %v90, %v114
    %117 = vset.pattern.permute.xlu0 2
    %118 = vperm.xlu0 %117, %v62
    %v119 = vpop.permute.xlu0 %118
    %v121 = vlaneseq
    %v122 = vshrl.u32 %v121, 7
    %v123 = vsub.s32 2, %v122
    %v124 = vrot.slane %v63, %v123
    %v125 = vlaneseq
    %v126 = vshrl.u32 %v125, 7
    %v127 = vsub.s32 6, %v126
    %v128 = vrot.slane %v63, %v127
    %v131 = vlaneseq
    %v132 = vshrl.u32 %v131, 7
    %v133 = vsub.s32 2, %v132
    %v134 = vrot.slane %v124, %v133
    %v135 = vlaneseq
    %v136 = vshrl.u32 %v135, 7
    %v137 = vsub.s32 2, %v136
    %v138 = vrot.slane %v128, %v137
    %v139 = vmul.f32 %v119, %v134
    %v140 = vmul.f32 %v119, %v138
    %v141 = vadd.f32 %v115, %v139
    %v142 = vadd.f32 %v116, %v140
    %v144 = vlaneseq
    %v145 = vshrl.u32 %v144, 7
    %v146 = vsub.s32 0, %v145
    %v147 = vrot.slane %v64, %v146
    %v148 = vlaneseq
    %v149 = vshrl.u32 %v148, 7
    %v150 = vsub.s32 1, %v149
    %v151 = vrot.slane %v64, %v150
    %v154 = vadd.f32 %v141, %v147
    %v155 = vadd.f32 %v142, %v151
    %v156 = vmax.f32 %v154, 0.0
    %v157 = vmax.f32 %v155, 0.0
    %v158 = vrot.slane %v156, 4
    %v159 = vadd.f32 %v156, %v158
    %v160 = vrot.slane %v159, 2
    %v161 = vadd.f32 %v159, %v160
    %v162 = vrot.slane %v161, 1
    %v163 = vadd.f32 %v161, %v162
    %v164 = vrot.slane %v157, 4
    %v165 = vadd.f32 %v157, %v164
    %v166 = vrot.slane %v165, 2
    %v167 = vadd.f32 %v165, %v166
    %v168 = vrot.slane %v167, 1
    %v169 = vadd.f32 %v167, %v168
    %v170 = vmul.f32 %v163, 0.125
    %v171 = vmul.f32 %v169, 0.125
    %v172 = vmul.f32 %v156, %v156
    %v173 = vmul.f32 %v157, %v157
    %v174 = vrot.slane %v172, 4
    %v175 = vadd.f32 %v172, %v174
    %v176 = vrot.slane %v175, 2
    %v177 = vadd.f32 %v175, %v176
    %v178 = vrot.slane %v177, 1
    %v179 = vadd.f32 %v177, %v178
    %v180 = vrot.slane %v173, 4
    %v181 = vadd.f32 %v173, %v180
    %v182 = vrot.slane %v181, 2
    %v183 = vadd.f32 %v181, %v182
    %v184 = vrot.slane %v183, 1
    %v185 = vadd.f32 %v183, %v184
    %v186 = vmul.f32 %v179, 0.125
    %v187 = vmul.f32 %v185, 0.125
    %v188 = vmul.f32 %v170, %v170
    %v189 = vmul.f32 %v171, %v171
    %v190 = vsub.f32 %v186, %v188
    %v191 = vsub.f32 %v187, %v189
    %v192 = vmax.f32 %v190, 0.0
    %v193 = vmax.f32 %v191, 0.0
    %v194 = vadd.f32 %v192, 1e-05
    %v195 = vadd.f32 %v193, 1e-05
    %v196 = vrsqrt.pop %v194
    %v197 = vrsqrt.pop %v195
    %v198 = vld [vmem:[%s3] sm:$0x3]
    %v200 = vlaneseq
    %v201 = vshrl.u32 %v200, 7
    %v202 = vsub.s32 0, %v201
    %v203 = vrot.slane %v198, %v202
    %v204 = vlaneseq
    %v205 = vshrl.u32 %v204, 7
    %v206 = vsub.s32 1, %v205
    %v207 = vrot.slane %v198, %v206
    %v210 = vmul.f32 %v196, %v203
    %v211 = vmul.f32 %v197, %v207
    %v212 = vld [vmem:[%s4] sm:$0x3]
    %v213 = vmul.f32 %v170, %v210
    %v214 = vmul.f32 %v171, %v211
    %v217 = vcombine.low %v213, %v214
    %v219 = vunpack.c.l.s4 1966171168
    %v220 = vunpack.c.0.s8 %v219
    %v221 = vlaneseq
    %v222 = vshrl.u32 %v221, 7
    %v223 = vsub.s32 %v220, %v222
    %v224 = vrot.slane %v217, %v223
    %v226 = vunpack.c.l.s4 1966171168
    %v227 = vunpack.c.0.s8 %v226
    %v228 = vlaneseq
    %v229 = vshrl.u32 %v228, 7
    %v230 = vsub.s32 %v227, %v229
    %v231 = vrot.slane %v224, %v230
    %v233 = vsub.f32 %v212, %v231
    %v234 = vlaneseq
    %v235 = vshrl.u32 %v234, 7
    %v236 = vsub.s32 0, %v235
    %v237 = vrot.slane %v210, %v236
    %v238 = vlaneseq
    %v239 = vshrl.u32 %v238, 7
    %v240 = vsub.s32 0, %v239
    %v241 = vrot.slane %v211, %v240
    %v242 = vmul.f32 %v156, %v237
    %v243 = vmul.f32 %v157, %v241
    %v245 = vlaneseq
    %v246 = vshrl.u32 %v245, 7
    %v247 = vsub.s32 0, %v246
    %v248 = vrot.slane %v233, %v247
    %v249 = vlaneseq
    %v250 = vshrl.u32 %v249, 7
    %v251 = vsub.s32 1, %v250
    %v252 = vrot.slane %v233, %v251
    %v255 = vadd.f32 %v242, %v248
    %v256 = vadd.f32 %v243, %v252
    %v257 = vpack.c.bf16 %v255, %v255
    %v258 = vpack.c.bf16 %v256, %v256
    %v259 = vld [vmem:[#allocation2] sm:$0xff]
    %v260 = vld [vmem:[#allocation2 + $0x8] sm:$0xff]
    %v261 = vld [vmem:[#allocation2 + $0x10] sm:$0xff]
    %v262 = vld [vmem:[#allocation2 + $0x18] sm:$0xff]
    %v263 = vld [vmem:[#allocation2 + $0x20] sm:$0xff]
    %v264 = vld [vmem:[#allocation2 + $0x28] sm:$0xff]
    %v265 = vld [vmem:[#allocation2 + $0x30] sm:$0xff]
    %v266 = vld [vmem:[#allocation2 + $0x38] sm:$0xff]
    %v267 = vld [vmem:[#allocation2 + $0x40] sm:$0xff]
    %v268 = vld [vmem:[#allocation2 + $0x48] sm:$0xff]
    %v269 = vld [vmem:[#allocation2 + $0x50] sm:$0xff]
    %v270 = vld [vmem:[#allocation2 + $0x58] sm:$0xff]
    %v271 = vld [vmem:[#allocation2 + $0x60] sm:$0xff]
    %v272 = vld [vmem:[#allocation2 + $0x68] sm:$0xff]
    %v273 = vld [vmem:[#allocation2 + $0x70] sm:$0xff]
    %v274 = vld [vmem:[#allocation2 + $0x78] sm:$0xff]
    %v275 = vld [vmem:[#allocation2 + $0x80] sm:$0xff]
    %v276 = vld [vmem:[#allocation2 + $0x88] sm:$0xff]
    %v277 = vld [vmem:[#allocation2 + $0x90] sm:$0xff]
    %v278 = vld [vmem:[#allocation2 + $0x98] sm:$0xff]
    %v279 = vld [vmem:[#allocation2 + $0xa0] sm:$0xff]
    %v280 = vld [vmem:[#allocation2 + $0xa8] sm:$0xff]
    %v281 = vld [vmem:[#allocation2 + $0xb0] sm:$0xff]
    %v282 = vld [vmem:[#allocation2 + $0xb8] sm:$0xff]
    %v283 = vld [vmem:[#allocation2 + $0xc0] sm:$0xff]
    %v284 = vld [vmem:[#allocation2 + $0xc8] sm:$0xff]
    %v285 = vld [vmem:[#allocation2 + $0xd0] sm:$0xff]
    %v286 = vld [vmem:[#allocation2 + $0xd8] sm:$0xff]
    %v287 = vld [vmem:[#allocation2 + $0xe0] sm:$0xff]
    %v288 = vld [vmem:[#allocation2 + $0xe8] sm:$0xff]
    %v289 = vld [vmem:[#allocation2 + $0xf0] sm:$0xff]
    %v290 = vld [vmem:[#allocation2 + $0xf8] sm:$0xff]
    %v291 = vld [vmem:[#allocation2 + $0x100] sm:$0xff]
    %v292 = vld [vmem:[#allocation2 + $0x108] sm:$0xff]
    %v293 = vld [vmem:[#allocation2 + $0x110] sm:$0xff]
    %v294 = vld [vmem:[#allocation2 + $0x118] sm:$0xff]
    %v295 = vld [vmem:[#allocation2 + $0x120] sm:$0xff]
    %v296 = vld [vmem:[#allocation2 + $0x128] sm:$0xff]
    %v297 = vld [vmem:[#allocation2 + $0x130] sm:$0xff]
    %v298 = vld [vmem:[#allocation2 + $0x138] sm:$0xff]
    %v299 = vld [vmem:[#allocation2 + $0x140] sm:$0xff]
    %v300 = vld [vmem:[#allocation2 + $0x148] sm:$0xff]
    %v301 = vld [vmem:[#allocation2 + $0x150] sm:$0xff]
    %v302 = vld [vmem:[#allocation2 + $0x158] sm:$0xff]
    %v303 = vld [vmem:[#allocation2 + $0x160] sm:$0xff]
    %v304 = vld [vmem:[#allocation2 + $0x168] sm:$0xff]
    %v305 = vld [vmem:[#allocation2 + $0x170] sm:$0xff]
    %v306 = vld [vmem:[#allocation2 + $0x178] sm:$0xff]
    %v307 = vld [vmem:[#allocation2 + $0x180] sm:$0xff]
    %v308 = vld [vmem:[#allocation2 + $0x188] sm:$0xff]
    %v309 = vld [vmem:[#allocation2 + $0x190] sm:$0xff]
    %v310 = vld [vmem:[#allocation2 + $0x198] sm:$0xff]
    %v311 = vld [vmem:[#allocation2 + $0x1a0] sm:$0xff]
    %v312 = vld [vmem:[#allocation2 + $0x1a8] sm:$0xff]
    %v313 = vld [vmem:[#allocation2 + $0x1b0] sm:$0xff]
    %v314 = vld [vmem:[#allocation2 + $0x1b8] sm:$0xff]
    %v315 = vld [vmem:[#allocation2 + $0x1c0] sm:$0xff]
    %v316 = vld [vmem:[#allocation2 + $0x1c8] sm:$0xff]
    %v317 = vld [vmem:[#allocation2 + $0x1d0] sm:$0xff]
    %v318 = vld [vmem:[#allocation2 + $0x1d8] sm:$0xff]
    %v319 = vld [vmem:[#allocation2 + $0x1e0] sm:$0xff]
    %v320 = vld [vmem:[#allocation2 + $0x1e8] sm:$0xff]
    %v321 = vld [vmem:[#allocation2 + $0x1f0] sm:$0xff]
    %v322 = vld [vmem:[#allocation2 + $0x1f8] sm:$0xff]
    %v323 = vld [vmem:[%s6] sm:$0xf]
    %v325 = vlaneseq
    %v326 = vshrl.u32 %v325, 7
    %v327 = vsub.s32 0, %v326
    %v328 = vrot.slane %v323, %v327
    %v329 = vlaneseq
    %v330 = vshrl.u32 %v329, 7
    %v331 = vsub.s32 1, %v330
    %v332 = vrot.slane %v323, %v331
    %v333 = vlaneseq
    %v334 = vshrl.u32 %v333, 7
    %v335 = vsub.s32 2, %v334
    %v336 = vrot.slane %v323, %v335
    %v337 = vlaneseq
    %v338 = vshrl.u32 %v337, 7
    %v339 = vsub.s32 3, %v338
    %v340 = vrot.slane %v323, %v339
    %v409 = vunpack.c.l.b16 %v259
    %v410 = vunpack.c.h.b16 %v259
    %v411 = vunpack.c.l.b16 %v260
    %v412 = vunpack.c.h.b16 %v260
    %v413 = vunpack.c.l.b16 %v261
    %v414 = vunpack.c.h.b16 %v261
    %v415 = vunpack.c.l.b16 %v262
    %v416 = vunpack.c.h.b16 %v262
    %v417 = vunpack.c.l.b16 %v263
    %v418 = vunpack.c.h.b16 %v263
    %v419 = vunpack.c.l.b16 %v264
    %v420 = vunpack.c.h.b16 %v264
    %v421 = vunpack.c.l.b16 %v265
    %v422 = vunpack.c.h.b16 %v265
    %v423 = vunpack.c.l.b16 %v266
    %v424 = vunpack.c.h.b16 %v266
    %v425 = vunpack.c.l.b16 %v267
    %v426 = vunpack.c.h.b16 %v267
    %v427 = vunpack.c.l.b16 %v268
    %v428 = vunpack.c.h.b16 %v268
    %v429 = vunpack.c.l.b16 %v269
    %v430 = vunpack.c.h.b16 %v269
    %v431 = vunpack.c.l.b16 %v270
    %v432 = vunpack.c.h.b16 %v270
    %v433 = vunpack.c.l.b16 %v271
    %v434 = vunpack.c.h.b16 %v271
    %v435 = vunpack.c.l.b16 %v272
    %v436 = vunpack.c.h.b16 %v272
    %v437 = vunpack.c.l.b16 %v273
    %v438 = vunpack.c.h.b16 %v273
    %v439 = vunpack.c.l.b16 %v274
    %v440 = vunpack.c.h.b16 %v274
    %v441 = vunpack.c.l.b16 %v275
    %v442 = vunpack.c.h.b16 %v275
    %v443 = vunpack.c.l.b16 %v276
    %v444 = vunpack.c.h.b16 %v276
    %v445 = vunpack.c.l.b16 %v277
    %v446 = vunpack.c.h.b16 %v277
    %v447 = vunpack.c.l.b16 %v278
    %v448 = vunpack.c.h.b16 %v278
    %v449 = vunpack.c.l.b16 %v279
    %v450 = vunpack.c.h.b16 %v279
    %v451 = vunpack.c.l.b16 %v280
    %v452 = vunpack.c.h.b16 %v280
    %v453 = vunpack.c.l.b16 %v281
    %v454 = vunpack.c.h.b16 %v281
    %v455 = vunpack.c.l.b16 %v282
    %v456 = vunpack.c.h.b16 %v282
    %v457 = vunpack.c.l.b16 %v283
    %v458 = vunpack.c.h.b16 %v283
    %v459 = vunpack.c.l.b16 %v284
    %v460 = vunpack.c.h.b16 %v284
    %v461 = vunpack.c.l.b16 %v285
    %v462 = vunpack.c.h.b16 %v285
    %v463 = vunpack.c.l.b16 %v286
    %v464 = vunpack.c.h.b16 %v286
    %v465 = vunpack.c.l.b16 %v287
    %v466 = vunpack.c.h.b16 %v287
    %v467 = vunpack.c.l.b16 %v288
    %v468 = vunpack.c.h.b16 %v288
    %v469 = vunpack.c.l.b16 %v289
    %v470 = vunpack.c.h.b16 %v289
    %v471 = vunpack.c.l.b16 %v290
    %v472 = vunpack.c.h.b16 %v290
    %v473 = vunpack.c.l.b16 %v291
    %v474 = vunpack.c.h.b16 %v291
    %v475 = vunpack.c.l.b16 %v292
    %v476 = vunpack.c.h.b16 %v292
    %v477 = vunpack.c.l.b16 %v293
    %v478 = vunpack.c.h.b16 %v293
    %v479 = vunpack.c.l.b16 %v294
    %v480 = vunpack.c.h.b16 %v294
    %v481 = vunpack.c.l.b16 %v295
    %v482 = vunpack.c.h.b16 %v295
    %v483 = vunpack.c.l.b16 %v296
    %v484 = vunpack.c.h.b16 %v296
    %v485 = vunpack.c.l.b16 %v297
    %v486 = vunpack.c.h.b16 %v297
    %v487 = vunpack.c.l.b16 %v298
    %v488 = vunpack.c.h.b16 %v298
    %v489 = vunpack.c.l.b16 %v299
    %v490 = vunpack.c.h.b16 %v299
    %v491 = vunpack.c.l.b16 %v300
    %v492 = vunpack.c.h.b16 %v300
    %v493 = vunpack.c.l.b16 %v301
    %v494 = vunpack.c.h.b16 %v301
    %v495 = vunpack.c.l.b16 %v302
    %v496 = vunpack.c.h.b16 %v302
    %v497 = vunpack.c.l.b16 %v303
    %v498 = vunpack.c.h.b16 %v303
    %v499 = vunpack.c.l.b16 %v304
    %v500 = vunpack.c.h.b16 %v304
    %v501 = vunpack.c.l.b16 %v305
    %v502 = vunpack.c.h.b16 %v305
    %v503 = vunpack.c.l.b16 %v306
    %v504 = vunpack.c.h.b16 %v306
    %v505 = vunpack.c.l.b16 %v307
    %v506 = vunpack.c.h.b16 %v307
    %v507 = vunpack.c.l.b16 %v308
    %v508 = vunpack.c.h.b16 %v308
    %v509 = vunpack.c.l.b16 %v309
    %v510 = vunpack.c.h.b16 %v309
    %v511 = vunpack.c.l.b16 %v310
    %v512 = vunpack.c.h.b16 %v310
    %v513 = vunpack.c.l.b16 %v311
    %v514 = vunpack.c.h.b16 %v311
    %v515 = vunpack.c.l.b16 %v312
    %v516 = vunpack.c.h.b16 %v312
    %v517 = vunpack.c.l.b16 %v313
    %v518 = vunpack.c.h.b16 %v313
    %v519 = vunpack.c.l.b16 %v314
    %v520 = vunpack.c.h.b16 %v314
    %v521 = vunpack.c.l.b16 %v315
    %v522 = vunpack.c.h.b16 %v315
    %v523 = vunpack.c.l.b16 %v316
    %v524 = vunpack.c.h.b16 %v316
    %v525 = vunpack.c.l.b16 %v317
    %v526 = vunpack.c.h.b16 %v317
    %v527 = vunpack.c.l.b16 %v318
    %v528 = vunpack.c.h.b16 %v318
    %v529 = vunpack.c.l.b16 %v319
    %v530 = vunpack.c.h.b16 %v319
    %v531 = vunpack.c.l.b16 %v320
    %v532 = vunpack.c.h.b16 %v320
    %v533 = vunpack.c.l.b16 %v321
    %v534 = vunpack.c.h.b16 %v321
    %v535 = vunpack.c.l.b16 %v322
    %v536 = vunpack.c.h.b16 %v322
    %v537 = vpack.c.b16 %v413, %v409
    %v538 = vpack.c.b16 %v414, %v410
    %v539 = vpack.c.b16 %v415, %v411
    %v540 = vpack.c.b16 %v416, %v412
    %v541 = vpack.c.b16 %v421, %v417
    %v542 = vpack.c.b16 %v422, %v418
    %v543 = vpack.c.b16 %v423, %v419
    %v544 = vpack.c.b16 %v424, %v420
    %v545 = vpack.c.b16 %v429, %v425
    %v546 = vpack.c.b16 %v430, %v426
    %v547 = vpack.c.b16 %v431, %v427
    %v548 = vpack.c.b16 %v432, %v428
    %v549 = vpack.c.b16 %v437, %v433
    %v550 = vpack.c.b16 %v438, %v434
    %v551 = vpack.c.b16 %v439, %v435
    %v552 = vpack.c.b16 %v440, %v436
    %v553 = vpack.c.b16 %v445, %v441
    %v554 = vpack.c.b16 %v446, %v442
    %v555 = vpack.c.b16 %v447, %v443
    %v556 = vpack.c.b16 %v448, %v444
    %v557 = vpack.c.b16 %v453, %v449
    %v558 = vpack.c.b16 %v454, %v450
    %v559 = vpack.c.b16 %v455, %v451
    %v560 = vpack.c.b16 %v456, %v452
    %v561 = vpack.c.b16 %v461, %v457
    %v562 = vpack.c.b16 %v462, %v458
    %v563 = vpack.c.b16 %v463, %v459
    %v564 = vpack.c.b16 %v464, %v460
    %v565 = vpack.c.b16 %v469, %v465
    %v566 = vpack.c.b16 %v470, %v466
    %v567 = vpack.c.b16 %v471, %v467
    %v568 = vpack.c.b16 %v472, %v468
    %v569 = vpack.c.b16 %v477, %v473
    %v570 = vpack.c.b16 %v478, %v474
    %v571 = vpack.c.b16 %v479, %v475
    %v572 = vpack.c.b16 %v480, %v476
    %v573 = vpack.c.b16 %v485, %v481
    %v574 = vpack.c.b16 %v486, %v482
    %v575 = vpack.c.b16 %v487, %v483
    %v576 = vpack.c.b16 %v488, %v484
    %v577 = vpack.c.b16 %v493, %v489
    %v578 = vpack.c.b16 %v494, %v490
    %v579 = vpack.c.b16 %v495, %v491
    %v580 = vpack.c.b16 %v496, %v492
    %v581 = vpack.c.b16 %v501, %v497
    %v582 = vpack.c.b16 %v502, %v498
    %v583 = vpack.c.b16 %v503, %v499
    %v584 = vpack.c.b16 %v504, %v500
    %v585 = vpack.c.b16 %v509, %v505
    %v586 = vpack.c.b16 %v510, %v506
    %v587 = vpack.c.b16 %v511, %v507
    %v588 = vpack.c.b16 %v512, %v508
    %v589 = vpack.c.b16 %v517, %v513
    %v590 = vpack.c.b16 %v518, %v514
    %v591 = vpack.c.b16 %v519, %v515
    %v592 = vpack.c.b16 %v520, %v516
    %v593 = vpack.c.b16 %v525, %v521
    %v594 = vpack.c.b16 %v526, %v522
    %v595 = vpack.c.b16 %v527, %v523
    %v596 = vpack.c.b16 %v528, %v524
    %v597 = vpack.c.b16 %v533, %v529
    %v598 = vpack.c.b16 %v534, %v530
    %v599 = vpack.c.b16 %v535, %v531
    %v600 = vpack.c.b16 %v536, %v532
    %665 = vmatprep.subr.bf16.mxu0 %v538
    %666 = vmatpush1.bf16.msra.mxu0 %v537
    %667 = vmatprep.subr.bf16.mxu0 %v542
    %668 = vmatpush1.bf16.msra.mxu0 %v541
    %669 = vmatprep.subr.bf16.mxu0 %v546
    %670 = vmatpush1.bf16.msra.mxu0 %v545
    %671 = vmatprep.subr.bf16.mxu0 %v550
    %672 = vmatpush1.bf16.msra.mxu0 %v549
    %673 = vmatprep.subr.bf16.mxu0 %v554
    %674 = vmatpush1.bf16.msra.mxu0 %v553
    %675 = vmatprep.subr.bf16.mxu0 %v558
    %676 = vmatpush1.bf16.msra.mxu0 %v557
    %677 = vmatprep.subr.bf16.mxu0 %v562
    %678 = vmatpush1.bf16.msra.mxu0 %v561
    %679 = vmatprep.subr.bf16.mxu0 %v566
    %680 = vmatpush1.bf16.msra.mxu0 %v565
    %681 = vmatprep.subr.bf16.mxu0 %v570
    %682 = vmatpush1.bf16.msra.mxu0 %v569
    %683 = vmatprep.subr.bf16.mxu0 %v574
    %684 = vmatpush1.bf16.msra.mxu0 %v573
    %685 = vmatprep.subr.bf16.mxu0 %v578
    %686 = vmatpush1.bf16.msra.mxu0 %v577
    %687 = vmatprep.subr.bf16.mxu0 %v582
    %688 = vmatpush1.bf16.msra.mxu0 %v581
    %689 = vmatprep.subr.bf16.mxu0 %v586
    %690 = vmatpush1.bf16.msra.mxu0 %v585
    %691 = vmatprep.subr.bf16.mxu0 %v590
    %692 = vmatpush1.bf16.msra.mxu0 %v589
    %693 = vmatprep.subr.bf16.mxu0 %v594
    %694 = vmatpush1.bf16.msra.mxu0 %v593
    %695 = vmatprep.subr.bf16.mxu0 %v598
    %696 = vmatpush1.bf16.msra.mxu0 %v597
    %697 = vmatprep.mubr.bf16.mxu0 %v258
    %698 = vmatmul.mubr.bf16.gmra.mrb[0].mxu0 %v257
    %v699 = vpop.f32.mrb[0].mxu0
    %v700 = vadd.f32 %v328, %v699
    %v701 = vpop.f32.mrb[0].mxu0
    %v702 = vadd.f32 %v332, %v701
    %v703 = vpop.f32.mrb[0].mxu0
    %v704 = vpop.f32.mrb[0].mxu0
    %705 = vdwg.mxu0
    %706 = vmatprep.subr.bf16.mxu0 %v540
    %707 = vmatpush1.bf16.msra.mxu0 %v539
    %708 = vmatprep.subr.bf16.mxu0 %v544
    %709 = vmatpush1.bf16.msra.mxu0 %v543
    %710 = vmatprep.subr.bf16.mxu0 %v548
    %711 = vmatpush1.bf16.msra.mxu0 %v547
    %712 = vmatprep.subr.bf16.mxu0 %v552
    %713 = vmatpush1.bf16.msra.mxu0 %v551
    %714 = vmatprep.subr.bf16.mxu0 %v556
    %715 = vmatpush1.bf16.msra.mxu0 %v555
    %716 = vmatprep.subr.bf16.mxu0 %v560
    %717 = vmatpush1.bf16.msra.mxu0 %v559
    %718 = vmatprep.subr.bf16.mxu0 %v564
    %719 = vmatpush1.bf16.msra.mxu0 %v563
    %720 = vmatprep.subr.bf16.mxu0 %v568
    %721 = vmatpush1.bf16.msra.mxu0 %v567
    %722 = vmatprep.subr.bf16.mxu0 %v572
    %723 = vmatpush1.bf16.msra.mxu0 %v571
    %724 = vmatprep.subr.bf16.mxu0 %v576
    %725 = vmatpush1.bf16.msra.mxu0 %v575
    %726 = vmatprep.subr.bf16.mxu0 %v580
    %727 = vmatpush1.bf16.msra.mxu0 %v579
    %728 = vmatprep.subr.bf16.mxu0 %v584
    %729 = vmatpush1.bf16.msra.mxu0 %v583
    %730 = vmatprep.subr.bf16.mxu0 %v588
    %731 = vmatpush1.bf16.msra.mxu0 %v587
    %732 = vmatprep.subr.bf16.mxu0 %v592
    %733 = vmatpush1.bf16.msra.mxu0 %v591
    %734 = vmatprep.subr.bf16.mxu0 %v596
    %735 = vmatpush1.bf16.msra.mxu0 %v595
    %736 = vmatprep.subr.bf16.mxu0 %v600
    %737 = vmatpush1.bf16.msra.mxu0 %v599
    %738 = vmatprep.mubr.bf16.mxu0 %v258
    %739 = vmatmul.mubr.bf16.gmra.mrb[0].mxu0 %v257
    %v740 = vpop.f32.mrb[0].mxu0
    %v741 = vadd.f32 %v336, %v740
    %v742 = vpop.f32.mrb[0].mxu0
    %v743 = vadd.f32 %v340, %v742
    %v744 = vpop.f32.mrb[0].mxu0
    %v745 = vpop.f32.mrb[0].mxu0
    %746 = vdwg.mxu0
    %v747 = vmax.f32 %v700, 0.0
    %v748 = vmax.f32 %v702, 0.0
    %v749 = vmax.f32 %v741, 0.0
    %v750 = vmax.f32 %v743, 0.0
    %v751 = vpack.c.bf16 %v747, %v747
    %v752 = vpack.c.bf16 %v748, %v748
    %v753 = vpack.c.bf16 %v749, %v749
    %v754 = vpack.c.bf16 %v750, %v750
    %v755 = vld [vmem:[#allocation5] sm:$0xf]
    %v756 = vld [vmem:[#allocation5 + $0x4] sm:$0xf]
    %v757 = vld [vmem:[#allocation5 + $0x8] sm:$0xf]
    %v758 = vld [vmem:[#allocation5 + $0xc] sm:$0xf]
    %v759 = vld [vmem:[#allocation5 + $0x10] sm:$0xf]
    %v760 = vld [vmem:[#allocation5 + $0x14] sm:$0xf]
    %v761 = vld [vmem:[#allocation5 + $0x18] sm:$0xf]
    %v762 = vld [vmem:[#allocation5 + $0x1c] sm:$0xf]
    %v763 = vld [vmem:[#allocation5 + $0x20] sm:$0xf]
    %v764 = vld [vmem:[#allocation5 + $0x24] sm:$0xf]
    %v765 = vld [vmem:[#allocation5 + $0x28] sm:$0xf]
    %v766 = vld [vmem:[#allocation5 + $0x2c] sm:$0xf]
    %v767 = vld [vmem:[#allocation5 + $0x30] sm:$0xf]
    %v768 = vld [vmem:[#allocation5 + $0x34] sm:$0xf]
    %v769 = vld [vmem:[#allocation5 + $0x38] sm:$0xf]
    %v770 = vld [vmem:[#allocation5 + $0x3c] sm:$0xf]
    %v771 = vld [vmem:[#allocation5 + $0x40] sm:$0xf]
    %v772 = vld [vmem:[#allocation5 + $0x44] sm:$0xf]
    %v773 = vld [vmem:[#allocation5 + $0x48] sm:$0xf]
    %v774 = vld [vmem:[#allocation5 + $0x4c] sm:$0xf]
    %v775 = vld [vmem:[#allocation5 + $0x50] sm:$0xf]
    %v776 = vld [vmem:[#allocation5 + $0x54] sm:$0xf]
    %v777 = vld [vmem:[#allocation5 + $0x58] sm:$0xf]
    %v778 = vld [vmem:[#allocation5 + $0x5c] sm:$0xf]
    %v779 = vld [vmem:[#allocation5 + $0x60] sm:$0xf]
    %v780 = vld [vmem:[#allocation5 + $0x64] sm:$0xf]
    %v781 = vld [vmem:[#allocation5 + $0x68] sm:$0xf]
    %v782 = vld [vmem:[#allocation5 + $0x6c] sm:$0xf]
    %v783 = vld [vmem:[#allocation5 + $0x70] sm:$0xf]
    %v784 = vld [vmem:[#allocation5 + $0x74] sm:$0xf]
    %v785 = vld [vmem:[#allocation5 + $0x78] sm:$0xf]
    %v786 = vld [vmem:[#allocation5 + $0x7c] sm:$0xf]
    %v787 = vld [vmem:[#allocation5 + $0x80] sm:$0xf]
    %v788 = vld [vmem:[#allocation5 + $0x84] sm:$0xf]
    %v789 = vld [vmem:[#allocation5 + $0x88] sm:$0xf]
    %v790 = vld [vmem:[#allocation5 + $0x8c] sm:$0xf]
    %v791 = vld [vmem:[#allocation5 + $0x90] sm:$0xf]
    %v792 = vld [vmem:[#allocation5 + $0x94] sm:$0xf]
    %v793 = vld [vmem:[#allocation5 + $0x98] sm:$0xf]
    %v794 = vld [vmem:[#allocation5 + $0x9c] sm:$0xf]
    %v795 = vld [vmem:[#allocation5 + $0xa0] sm:$0xf]
    %v796 = vld [vmem:[#allocation5 + $0xa4] sm:$0xf]
    %v797 = vld [vmem:[#allocation5 + $0xa8] sm:$0xf]
    %v798 = vld [vmem:[#allocation5 + $0xac] sm:$0xf]
    %v799 = vld [vmem:[#allocation5 + $0xb0] sm:$0xf]
    %v800 = vld [vmem:[#allocation5 + $0xb4] sm:$0xf]
    %v801 = vld [vmem:[#allocation5 + $0xb8] sm:$0xf]
    %v802 = vld [vmem:[#allocation5 + $0xbc] sm:$0xf]
    %v803 = vld [vmem:[#allocation5 + $0xc0] sm:$0xf]
    %v804 = vld [vmem:[#allocation5 + $0xc4] sm:$0xf]
    %v805 = vld [vmem:[#allocation5 + $0xc8] sm:$0xf]
    %v806 = vld [vmem:[#allocation5 + $0xcc] sm:$0xf]
    %v807 = vld [vmem:[#allocation5 + $0xd0] sm:$0xf]
    %v808 = vld [vmem:[#allocation5 + $0xd4] sm:$0xf]
    %v809 = vld [vmem:[#allocation5 + $0xd8] sm:$0xf]
    %v810 = vld [vmem:[#allocation5 + $0xdc] sm:$0xf]
    %v811 = vld [vmem:[#allocation5 + $0xe0] sm:$0xf]
    %v812 = vld [vmem:[#allocation5 + $0xe4] sm:$0xf]
    %v813 = vld [vmem:[#allocation5 + $0xe8] sm:$0xf]
    %v814 = vld [vmem:[#allocation5 + $0xec] sm:$0xf]
    %v815 = vld [vmem:[#allocation5 + $0xf0] sm:$0xf]
    %v816 = vld [vmem:[#allocation5 + $0xf4] sm:$0xf]
    %v817 = vld [vmem:[#allocation5 + $0xf8] sm:$0xf]
    %v818 = vld [vmem:[#allocation5 + $0xfc] sm:$0xf]
    %v819 = vld [vmem:[%s8] sm:$0x1]
    %v821 = vlaneseq
    %v822 = vshrl.u32 %v821, 7
    %v823 = vsub.s32 0, %v822
    %v824 = vrot.slane %v819, %v823
    %v890 = vunpack.c.l.b16 %v755
    %v891 = vunpack.c.l.b16 %v756
    %v892 = vunpack.c.l.b16 %v757
    %v893 = vunpack.c.l.b16 %v758
    %v894 = vunpack.c.l.b16 %v759
    %v895 = vunpack.c.l.b16 %v760
    %v896 = vunpack.c.l.b16 %v761
    %v897 = vunpack.c.l.b16 %v762
    %v898 = vunpack.c.l.b16 %v763
    %v899 = vunpack.c.l.b16 %v764
    %v900 = vunpack.c.l.b16 %v765
    %v901 = vunpack.c.l.b16 %v766
    %v902 = vunpack.c.l.b16 %v767
    %v903 = vunpack.c.l.b16 %v768
    %v904 = vunpack.c.l.b16 %v769
    %v905 = vunpack.c.l.b16 %v770
    %v906 = vunpack.c.l.b16 %v771
    %v907 = vunpack.c.l.b16 %v772
    %v908 = vunpack.c.l.b16 %v773
    %v909 = vunpack.c.l.b16 %v774
    %v910 = vunpack.c.l.b16 %v775
    %v911 = vunpack.c.l.b16 %v776
    %v912 = vunpack.c.l.b16 %v777
    %v913 = vunpack.c.l.b16 %v778
    %v914 = vunpack.c.l.b16 %v779
    %v915 = vunpack.c.l.b16 %v780
    %v916 = vunpack.c.l.b16 %v781
    %v917 = vunpack.c.l.b16 %v782
    %v918 = vunpack.c.l.b16 %v783
    %v919 = vunpack.c.l.b16 %v784
    %v920 = vunpack.c.l.b16 %v785
    %v921 = vunpack.c.l.b16 %v786
    %v922 = vunpack.c.l.b16 %v787
    %v923 = vunpack.c.l.b16 %v788
    %v924 = vunpack.c.l.b16 %v789
    %v925 = vunpack.c.l.b16 %v790
    %v926 = vunpack.c.l.b16 %v791
    %v927 = vunpack.c.l.b16 %v792
    %v928 = vunpack.c.l.b16 %v793
    %v929 = vunpack.c.l.b16 %v794
    %v930 = vunpack.c.l.b16 %v795
    %v931 = vunpack.c.l.b16 %v796
    %v932 = vunpack.c.l.b16 %v797
    %v933 = vunpack.c.l.b16 %v798
    %v934 = vunpack.c.l.b16 %v799
    %v935 = vunpack.c.l.b16 %v800
    %v936 = vunpack.c.l.b16 %v801
    %v937 = vunpack.c.l.b16 %v802
    %v938 = vunpack.c.l.b16 %v803
    %v939 = vunpack.c.l.b16 %v804
    %v940 = vunpack.c.l.b16 %v805
    %v941 = vunpack.c.l.b16 %v806
    %v942 = vunpack.c.l.b16 %v807
    %v943 = vunpack.c.l.b16 %v808
    %v944 = vunpack.c.l.b16 %v809
    %v945 = vunpack.c.l.b16 %v810
    %v946 = vunpack.c.l.b16 %v811
    %v947 = vunpack.c.l.b16 %v812
    %v948 = vunpack.c.l.b16 %v813
    %v949 = vunpack.c.l.b16 %v814
    %v950 = vunpack.c.l.b16 %v815
    %v951 = vunpack.c.l.b16 %v816
    %v952 = vunpack.c.l.b16 %v817
    %v953 = vunpack.c.l.b16 %v818
    %v954 = vpack.c.b16 %v891, %v890
    %v955 = vpack.c.b16 %v893, %v892
    %v956 = vpack.c.b16 %v895, %v894
    %v957 = vpack.c.b16 %v897, %v896
    %v958 = vpack.c.b16 %v899, %v898
    %v959 = vpack.c.b16 %v901, %v900
    %v960 = vpack.c.b16 %v903, %v902
    %v961 = vpack.c.b16 %v905, %v904
    %v962 = vpack.c.b16 %v907, %v906
    %v963 = vpack.c.b16 %v909, %v908
    %v964 = vpack.c.b16 %v911, %v910
    %v965 = vpack.c.b16 %v913, %v912
    %v966 = vpack.c.b16 %v915, %v914
    %v967 = vpack.c.b16 %v917, %v916
    %v968 = vpack.c.b16 %v919, %v918
    %v969 = vpack.c.b16 %v921, %v920
    %v970 = vpack.c.b16 %v923, %v922
    %v971 = vpack.c.b16 %v925, %v924
    %v972 = vpack.c.b16 %v927, %v926
    %v973 = vpack.c.b16 %v929, %v928
    %v974 = vpack.c.b16 %v931, %v930
    %v975 = vpack.c.b16 %v933, %v932
    %v976 = vpack.c.b16 %v935, %v934
    %v977 = vpack.c.b16 %v937, %v936
    %v978 = vpack.c.b16 %v939, %v938
    %v979 = vpack.c.b16 %v941, %v940
    %v980 = vpack.c.b16 %v943, %v942
    %v981 = vpack.c.b16 %v945, %v944
    %v982 = vpack.c.b16 %v947, %v946
    %v983 = vpack.c.b16 %v949, %v948
    %v984 = vpack.c.b16 %v951, %v950
    %v985 = vpack.c.b16 %v953, %v952
    %1018 = vmatprep.subr.bf16.mxu0 0
    %1019 = vmatpush1.bf16.msra.mxu0 %v954
    %1020 = vmatprep.subr.bf16.mxu0 0
    %1021 = vmatpush1.bf16.msra.mxu0 %v955
    %1022 = vmatprep.subr.bf16.mxu0 0
    %1023 = vmatpush1.bf16.msra.mxu0 %v956
    %1024 = vmatprep.subr.bf16.mxu0 0
    %1025 = vmatpush1.bf16.msra.mxu0 %v957
    %1026 = vmatprep.subr.bf16.mxu0 0
    %1027 = vmatpush1.bf16.msra.mxu0 %v958
    %1028 = vmatprep.subr.bf16.mxu0 0
    %1029 = vmatpush1.bf16.msra.mxu0 %v959
    %1030 = vmatprep.subr.bf16.mxu0 0
    %1031 = vmatpush1.bf16.msra.mxu0 %v960
    %1032 = vmatprep.subr.bf16.mxu0 0
    %1033 = vmatpush1.bf16.msra.mxu0 %v961
    %1034 = vmatprep.subr.bf16.mxu0 0
    %1035 = vmatpush1.bf16.msra.mxu0 %v962
    %1036 = vmatprep.subr.bf16.mxu0 0
    %1037 = vmatpush1.bf16.msra.mxu0 %v963
    %1038 = vmatprep.subr.bf16.mxu0 0
    %1039 = vmatpush1.bf16.msra.mxu0 %v964
    %1040 = vmatprep.subr.bf16.mxu0 0
    %1041 = vmatpush1.bf16.msra.mxu0 %v965
    %1042 = vmatprep.subr.bf16.mxu0 0
    %1043 = vmatpush1.bf16.msra.mxu0 %v966
    %1044 = vmatprep.subr.bf16.mxu0 0
    %1045 = vmatpush1.bf16.msra.mxu0 %v967
    %1046 = vmatprep.subr.bf16.mxu0 0
    %1047 = vmatpush1.bf16.msra.mxu0 %v968
    %1048 = vmatprep.subr.bf16.mxu0 0
    %1049 = vmatpush1.bf16.msra.mxu0 %v969
    %1050 = vmatprep.mubr.bf16.mxu0 %v752
    %1051 = vmatmul.mubr.bf16.gmra.mrb[0].mxu0 %v751
    %v1052 = vpop.f32.mrb[0].mxu0
    %v1053 = vadd.f32 %v824, %v1052
    %v1054 = vpop.f32.mrb[0].mxu0
    %v1055 = vpop.f32.mrb[0].mxu0
    %v1056 = vpop.f32.mrb[0].mxu0
    %1057 = vdwg.mxu0
    %1058 = vmatprep.subr.bf16.mxu0 0
    %1059 = vmatpush1.bf16.msra.mxu0 %v970
    %1060 = vmatprep.subr.bf16.mxu0 0
    %1061 = vmatpush1.bf16.msra.mxu0 %v971
    %1062 = vmatprep.subr.bf16.mxu0 0
    %1063 = vmatpush1.bf16.msra.mxu0 %v972
    %1064 = vmatprep.subr.bf16.mxu0 0
    %1065 = vmatpush1.bf16.msra.mxu0 %v973
    %1066 = vmatprep.subr.bf16.mxu0 0
    %1067 = vmatpush1.bf16.msra.mxu0 %v974
    %1068 = vmatprep.subr.bf16.mxu0 0
    %1069 = vmatpush1.bf16.msra.mxu0 %v975
    %1070 = vmatprep.subr.bf16.mxu0 0
    %1071 = vmatpush1.bf16.msra.mxu0 %v976
    %1072 = vmatprep.subr.bf16.mxu0 0
    %1073 = vmatpush1.bf16.msra.mxu0 %v977
    %1074 = vmatprep.subr.bf16.mxu0 0
    %1075 = vmatpush1.bf16.msra.mxu0 %v978
    %1076 = vmatprep.subr.bf16.mxu0 0
    %1077 = vmatpush1.bf16.msra.mxu0 %v979
    %1078 = vmatprep.subr.bf16.mxu0 0
    %1079 = vmatpush1.bf16.msra.mxu0 %v980
    %1080 = vmatprep.subr.bf16.mxu0 0
    %1081 = vmatpush1.bf16.msra.mxu0 %v981
    %1082 = vmatprep.subr.bf16.mxu0 0
    %1083 = vmatpush1.bf16.msra.mxu0 %v982
    %1084 = vmatprep.subr.bf16.mxu0 0
    %1085 = vmatpush1.bf16.msra.mxu0 %v983
    %1086 = vmatprep.subr.bf16.mxu0 0
    %1087 = vmatpush1.bf16.msra.mxu0 %v984
    %1088 = vmatprep.subr.bf16.mxu0 0
    %1089 = vmatpush1.bf16.msra.mxu0 %v985
    %1090 = vmatprep.mubr.bf16.mxu0 %v754
    %1091 = vmatmul.mubr.bf16.gmra.mrb[0].mxu0 %v753
    %v1092 = vpop.f32.mrb[0].mxu0
    %v1093 = vadd.f32 %v1053, %v1092
    %v1094 = vpop.f32.mrb[0].mxu0
    %v1095 = vpop.f32.mrb[0].mxu0
    %v1096 = vpop.f32.mrb[0].mxu0
    %1097 = vdwg.mxu0
    %v1098 = vxor.u32 %v1093, 2147483648
    %v1099 = vmul.f32 %v1098, 1.442695
    %v1100 = vpow.pop %v1099
    %v1101 = vadd.f32 %v1100, 1.0
    %v1102 = vrcp.pop %v1101
    %v1103 = vmul.f32 1.0, %v1102
    %vm1104 = vcmask 64512
    %1105 = vst.msk [vmem:[#allocation7] sm:$0xff] %vm1104, %v1103
    // Predicated region
    $region46: #{tpu_custom_call.1} parent=1 // pred_check
      _
    $region47: #{tpu_custom_call.1} parent=1 // pred_check_branch
      %1107 = sbr.rel (0) target = $region49
    $region48: #{tpu_custom_call.1} parent=1 // pred_region
      %s1109 = ssub.s32 128, 128
      %1110 = vsyncadd [#allocation4], %s1109
      %s1112 = sshll.u32 [#allocation7], 4
      %s1113 = int_to_ptr.vmem [resolvable:$true] %s1112
      %1115 = dma.vmem_to_hbm [thread:$0]  %s1113, 128, %s9, [#allocation4]
    $region49: #{tpu_custom_call.1} parent=1 // pred_fallthru
      _
    // Predicated region
    $region50: #{tpu_custom_call.1} parent=1 // pred_check
      _
    $region51: #{tpu_custom_call.1} parent=1 // pred_check_branch
      %1117 = sbr.rel (0) target = $region53
    $region52: #{tpu_custom_call.1} parent=1 // pred_region
      %1118 = dma.done [#allocation4], 128
    $region53: #{tpu_custom_call.1} parent=1 // pred_fallthru
      _
    %1119 = vsyncpa [#allocation3], 1
    %1120 = vsyncpa [#allocation6], 1
    %1121 = vsyncpa [#allocation4], 1

</llo_original>
